<compile_context>
chip_gen: v7x
topology: tpu7x:2x2x1
jax: 0.10.0
libtpu: 0.0.40
codegen_flags: <defaults>
</compile_context>

<pallas_src>
import functools
import math

import jax
import jax.numpy as jnp
import numpy as np
from jax.experimental import pallas as pl
from jax.experimental.pallas import tpu as pltpu


def _round_up(a, b):
    return ((a + b - 1) // b) * b


def _round_down(a, b):
    return (a // b) * b


def _label_smoothing_kernel(x_ref, tgtmask_ref, out_ref, acc_ref, *,
                            confidence, eps, n_rows, n_cols,
                            guard_rows, guard_cols):
    """Grid = (row blocks [parallel], vocab chunks [arbitrary]).

    Per (i, j): accumulate per-row  sum_{cols in chunk j} t * x  into acc_ref.
    On the last vocab chunk: apply the mask (and row-validity for a ragged row tail) and
    emit this row-block's scalar partials — sublane 0 = num, sublane 1 = den — into out_ref.
    """
    i = pl.program_id(0)
    j = pl.program_id(1)

    @pl.when(j == 0)
    def _():
        acc_ref[...] = jnp.zeros_like(acc_ref)

    x = x_ref[...]                                        # (tm, tv), native dtype
    tm, tv = x.shape
    tgt = tgtmask_ref[:, 0:1].astype(jnp.int32)           # (tm, 1) labels

    # One-hot via compare against the *global* column index of this vocab chunk.
    # Iota is a (1, tv) row, broadcast in the compare (no full (tm, tv) iota materialized).
    col = jax.lax.broadcasted_iota(jnp.int32, (1, tv), 1) + j * tv
    match = col == tgt                                    # (tm, tv) via broadcast

    # bf16 inputs: keep the select/mul packed in bf16; cast to f32 only for the reduction.
    # (bf16 constants cost <~0.2% rel. error — in line with bf16 inputs themselves.)
    cdt = jnp.bfloat16 if x.dtype == jnp.bfloat16 else jnp.float32
    t = jnp.where(match, jnp.asarray(confidence, dtype=cdt), jnp.asarray(eps, dtype=cdt))
    prod = (t * x).astype(jnp.float32)
    if guard_cols:
        # Ragged last vocab chunk: drop out-of-range columns (their x may be NaN/Inf).
        prod = jnp.where(col < n_cols, prod, 0.0)
    acc_ref[...] += jnp.sum(prod, axis=1, keepdims=True)  # (tm, 1) f32

    @pl.when(j == pl.num_programs(1) - 1)
    def _():
        m = tgtmask_ref[:, 1:2].astype(jnp.float32)       # (tm, 1) mask
        row = acc_ref[...]                                # (tm, 1) sum_j t*x
        if guard_rows:
            # Ragged last row block: invalid rows (possibly NaN/Inf) are discarded with a
            # select, never with a 0-multiply (0 * NaN = NaN).
            rid = jax.lax.broadcasted_iota(jnp.int32, (tm, 1), 0)
            valid = (i * tm + rid) < n_rows
            num_p = jnp.sum(jnp.where(valid, row * m, 0.0))
            den_p = jnp.sum(jnp.where(valid, m, 0.0))
        else:
            num_p = jnp.sum(row * m)
            den_p = jnp.sum(m)
        sid = jax.lax.broadcasted_iota(jnp.int32, out_ref.shape, 0)
        out_ref[...] = jnp.where(sid == 0, num_p,
                                 jnp.where(sid == 1, den_p, jnp.float32(0.0)))


def label_smoothing_loss(logp, target, mask, *, smoothing=0.0, vmem_budget_bytes=None):
    """Replicates LabelSmoothing.forward.

    logp:   (R, L, V) float log-probabilities (already log-softmaxed upstream)
    target: (R, L') or (N, B, L') integer labels
    mask:   same leading shape as target

    Returns a float32 scalar. Note: an all-zero mask yields NaN/Inf, matching PyTorch.
    """
    if target.ndim == 3:
        target = target.reshape(-1, target.shape[2])
        mask = mask.reshape(-1, mask.shape[2])
    L = logp.shape[1]
    target = target[:, :L]
    mask = mask[:, :L]

    V = logp.shape[-1]
    x = logp.reshape(-1, V)
    if x.dtype not in (jnp.float32, jnp.bfloat16):
        x = x.astype(jnp.float32)             # keep bf16 as bf16: halves HBM read traffic
    T = x.shape[0]

    # Pack target + mask into ONE (T, 2) f32 array -> one lane-padded VMEM tile / one DMA
    # per row block instead of two.  f32 carries labels exactly up to 2^24.
    tgtmask = jnp.stack([target.reshape(-1).astype(jnp.float32),
                         mask.reshape(-1).astype(jnp.float32)], axis=1)

    itemsize = jnp.dtype(x.dtype).itemsize
    row_align = {1: 32, 2: 16}.get(itemsize, 8)   # native sublane packing (bf16 -> 16 rows)

    # ---- generation-aware VMEM budget: v7x has 64 MiB/TC, v5e/v6e have 128 MiB ----
    try:
        vmem_cap = int(pltpu.get_tpu_info().vmem_capacity_bytes)
    except Exception:
        vmem_cap = 64 << 20                   # conservative fallback (v7x-sized)
    if vmem_budget_bytes is None:
        if vmem_cap <= (64 << 20):            # v7x-class
            vmem_budget_bytes = 26 << 20
            limit_cap = 40 << 20
        else:                                 # v5e / v6e
            vmem_budget_bytes = 52 << 20
            limit_cap = 72 << 20
    else:
        limit_cap = max(32 << 20, min(vmem_cap * 3 // 4, vmem_budget_bytes + (8 << 20)))

    # VMEM per row of a (tm, tv) tile: double-buffered x tile + f32 in-kernel intermediates
    # (one-hot, product) + packed tgt/mask tile (lane-padded, double-buffered) + (tm,1) acc.
    def per_row_bytes(tv_):
        return 2 * tv_ * itemsize + 2 * tv_ * 4 + 2 * 128 * 4 + 128 * 4

    def tm_for(tv_):
        t_ = max(1, vmem_budget_bytes // per_row_bytes(tv_))
        t_ = min(t_, 2048)
        if t_ >= T:
            return T                          # one full-extent row block
        return min(T, max(row_align, _round_down(t_, row_align)))

    # Vocab split: only for large V where a full-width tile would collapse tm.
    if V <= 1024 or tm_for(V) >= min(256, T):
        tv = V                                # full-extent vocab block (handles V % 128 != 0)
    else:
        per_col = 2 * itemsize + 2 * 4
        tv = vmem_budget_bytes // (256 * per_col)     # aim for >= ~256 rows per tile
        tv = max(128, _round_down(min(tv, V), 128))
    tm = tm_for(tv)

    # v7x megacore: ensure the "parallel" row axis has >= 2 steps so both TCs get work.
    if tm == T and T > row_align:
        tm = min(tm, _round_up(pl.cdiv(T, 2), row_align))

    G = pl.cdiv(T, tm)
    GV = pl.cdiv(V, tv)
    guard_rows = (T % tm) != 0                # ragged last row block (no jnp.pad of x!)
    guard_cols = (V % tv) != 0                # ragged last vocab chunk

    confidence = 1.0 - smoothing
    eps = smoothing / (V - 1)
    # sum_j xlogy(t, t) per row is a compile-time constant (xlogy(0, 0) = 0).
    C = 0.0
    if confidence > 0.0:
        C += confidence * math.log(confidence)
    if eps > 0.0:
        C += (V - 1) * eps * math.log(eps)

    kernel = functools.partial(
        _label_smoothing_kernel, confidence=confidence, eps=eps,
        n_rows=T, n_cols=V, guard_rows=guard_rows, guard_cols=guard_cols)

    tiles_bytes = tm * per_row_bytes(tv)
    vmem_limit = int(min(limit_cap, max(32 << 20, tiles_bytes + (4 << 20))))

    cost = pl.CostEstimate(
        flops=int(5 * T * V),
        transcendentals=0,
        bytes_accessed=int(T * V * itemsize + T * 2 * 4 + G * 8 * 128 * 4),
    )

    parts = pl.pallas_call(
        kernel,
        out_shape=jax.ShapeDtypeStruct((G * 8, 128), jnp.float32),
        grid_spec=pltpu.PrefetchScalarGridSpec(
            num_scalar_prefetch=0,
            grid=(G, GV),
            in_specs=[
                pl.BlockSpec((tm, tv), lambda i, j: (i, j)),
                pl.BlockSpec((tm, 2), lambda i, j: (i, 0)),
            ],
            out_specs=pl.BlockSpec((8, 128), lambda i, j: (i, 0)),
            scratch_shapes=[pltpu.VMEM((tm, 1), jnp.float32)],
        ),
        compiler_params=pltpu.CompilerParams(
            dimension_semantics=("parallel", "arbitrary"),
            vmem_limit_bytes=vmem_limit,
        ),
        cost_estimate=cost,
    )(x, tgtmask)

    parts = parts.reshape(G, 8, 128)
    num = jnp.sum(parts[:, 0, 0])
    den = jnp.sum(parts[:, 1, 0])
    return jnp.float32(C) - num / den


def _reference(logp, target, mask, smoothing):
    # Pure-JAX reference of the same forward pass (full xlogy form).
    if target.ndim == 3:
        target = target.reshape(-1, target.shape[2])
        mask = mask.reshape(-1, mask.shape[2])
    L = logp.shape[1]
    target = target[:, :L].reshape(-1)
    mask = mask[:, :L].reshape(-1).astype(jnp.float32)
    V = logp.shape[-1]
    x = logp.reshape(-1, V).astype(jnp.float32)
    conf = 1.0 - smoothing
    eps = smoothing / (V - 1)
    true_dist = jnp.full_like(x, eps)
    true_dist = true_dist.at[jnp.arange(x.shape[0]), target].set(conf)
    tlogt = jnp.where(true_dist > 0,
                      true_dist * jnp.log(jnp.where(true_dist > 0, true_dist, 1.0)),
                      0.0)
    elem = tlogt - true_dist * x
    return (elem.sum(1) * mask).sum() / mask.sum()


if __name__ == "__main__":
    k = jax.random.split(jax.random.PRNGKey(0), 9)
    checks = []

    # Case 1: aligned shapes (T=16, V=128), smoothing=0.1.
    N, L, V = 2, 8, 128
    logp = jax.nn.log_softmax(jax.random.normal(k[0], (N, L, V), dtype=jnp.float32), axis=-1)
    target = jax.random.randint(k[1], (N, L), 0, V, dtype=jnp.int32)
    mask = (jax.random.uniform(k[2], (N, L)) > 0.3).astype(jnp.float32)
    checks.append((label_smoothing_loss(logp, target, mask, smoothing=0.1),
                   _reference(logp, target, mask, 0.1)))

    # Case 2: ragged rows (T=21), non-128 vocab (V=100), target longer than L (sliced),
    #         smoothing=0.0 (pure NLL path).
    N, L, V, Lt = 3, 7, 100, 9
    logp = jax.nn.log_softmax(jax.random.normal(k[3], (N, L, V), dtype=jnp.float32), axis=-1)
    target = jax.random.randint(k[4], (N, Lt), 0, V, dtype=jnp.int32)
    mask = (jax.random.uniform(k[5], (N, Lt)) > 0.3).astype(jnp.float32)
    checks.append((label_smoothing_loss(logp, target, mask, smoothing=0.0),
                   _reference(logp, target, mask, 0.0)))

    # Case 3: 3-D target/mask path + vocab split (a tiny VMEM budget forces GV>1 with a
    #         ragged last vocab chunk) + ragged row tail, smoothing=0.2.
    N, B, L, V, Lt = 2, 2, 10, 1300, 12
    logp = jax.nn.log_softmax(jax.random.normal(k[6], (N * B, L, V), dtype=jnp.float32), axis=-1)
    target = jax.random.randint(k[7], (N, B, Lt), 0, V, dtype=jnp.int32)
    mask = (jax.random.uniform(k[8], (N, B, Lt)) > 0.3).astype(jnp.float32)
    checks.append((label_smoothing_loss(logp, target, mask, smoothing=0.2,
                                        vmem_budget_bytes=400 * 1024),
                   _reference(logp, target, mask, 0.2)))

    for out, ref in checks:
        out = jax.block_until_ready(out)
        np.testing.assert_allclose(np.asarray(out), np.asarray(ref), rtol=5e-5, atol=5e-5)
    print("KERNEL_OK")
</pallas_src>

<mosaic_0001>
module attributes {stable_mosaic.version = 11 : i64} {
  func.func @_label_smoothing_kernel(%arg0: i32, %arg1: i32, %arg2: memref<8x128xf32, #tpu.memory_space<vmem>>, %arg3: memref<8x2xf32, #tpu.memory_space<vmem>>, %arg4: memref<8x128xf32, #tpu.memory_space<vmem>>, %arg5: memref<8x1xf32, #tpu.memory_space<vmem>>) attributes {dimension_semantics = [#tpu.dimension_semantics<parallel>, #tpu.dimension_semantics<arbitrary>], iteration_bounds = array<i64: 2, 1>, scalar_prefetch = 0 : i64, scratch_operands = 1 : i64, tpu.core_type = #tpu.core_type<tc>, window_params = [{transform_indices = @transform_0, window_bounds = array<i64: 8, 128>}, {transform_indices = @transform_1, window_bounds = array<i64: 8, 2>}, {transform_indices = @transform_2, window_bounds = array<i64: 8, 128>}]} {
    %c0_i32 = arith.constant 0 : i32
    %0 = arith.cmpi eq, %arg1, %c0_i32 : i32
    %1 = arith.extui %0 : i1 to i32
    %c0_i32_0 = arith.constant 0 : i32
    %2 = arith.cmpi ne, %1, %c0_i32_0 : i32
    scf.if %2 {
      %cst_12 = arith.constant 0.000000e+00 : f32
      %25 = vector.broadcast %cst_12 : f32 to vector<8x1xf32>
      %c0_13 = arith.constant 0 : index
      %c0_14 = arith.constant 0 : index
      %26 = vector.load %arg5[%c0_13, %c0_14] : memref<8x1xf32, #tpu.memory_space<vmem>>, vector<8x1xf32>
      tpu.vector_store %arg5[%c0_13, %c0_14], %25 {strides = array<i32>} : memref<8x1xf32, #tpu.memory_space<vmem>>, vector<8x1xf32>,
    } else {
    }
    %c0 = arith.constant 0 : index
    %c0_1 = arith.constant 0 : index
    %3 = vector.load %arg2[%c0, %c0_1] : memref<8x128xf32, #tpu.memory_space<vmem>>, vector<8x128xf32>
    %c0_2 = arith.constant 0 : index
    %c0_3 = arith.constant 0 : index
    %4 = vector.load %arg3[%c0_2, %c0_3] : memref<8x2xf32, #tpu.memory_space<vmem>>, vector<8x1xf32>
    %5 = arith.fptosi %4 : vector<8x1xf32> to vector<8x1xi32>
    %6 = tpu.iota {dimensions = array<i32: 1>} : vector<1x128xi32>
    %c128_i32 = arith.constant 128 : i32
    %7 = arith.muli %arg1, %c128_i32 : i32
    %8 = vector.broadcast %7 : i32 to vector<1x128xi32>
    %9 = arith.addi %6, %8 : vector<1x128xi32>
    %10 = vector.broadcast %9 : vector<1x128xi32> to vector<8x128xi32>
    %11 = vector.broadcast %5 : vector<8x1xi32> to vector<8x128xi32>
    %12 = arith.cmpi eq, %10, %11 : vector<8x128xi32>
    %cst = arith.constant 0.899999976 : f32
    %cst_4 = arith.constant 7.87401571E-4 : f32
    %13 = vector.broadcast %cst : f32 to vector<8x128xf32>
    %14 = vector.broadcast %cst_4 : f32 to vector<8x128xf32>
    %15 = arith.select %12, %13, %14 : vector<8x128xi1>, vector<8x128xf32>
    %16 = arith.mulf %15, %3 : vector<8x128xf32>
    %c0_5 = arith.constant 0 : index
    %c0_6 = arith.constant 0 : index
    %17 = vector.load %arg5[%c0_5, %c0_6] : memref<8x1xf32, #tpu.memory_space<vmem>>, vector<8x1xf32>
    %cst_7 = arith.constant dense<0.000000e+00> : vector<8xf32>
    %18 = vector.multi_reduction <add>, %16, %cst_7 [1] : vector<8x128xf32> to vector<8xf32>
    %19 = vector.shape_cast %18 : vector<8xf32> to vector<8x1xf32>
    %20 = arith.addf %17, %19 : vector<8x1xf32>
    %c0_8 = arith.constant 0 : index
    %c0_9 = arith.constant 0 : index
    %21 = vector.load %arg5[%c0_8, %c0_9] : memref<8x1xf32, #tpu.memory_space<vmem>>, vector<8x1xf32>
    tpu.vector_store %arg5[%c0_8, %c0_9], %20 {strides = array<i32>} : memref<8x1xf32, #tpu.memory_space<vmem>>, vector<8x1xf32>,
    %c0_i32_10 = arith.constant 0 : i32
    %22 = arith.cmpi eq, %arg1, %c0_i32_10 : i32
    %23 = arith.extui %22 : i1 to i32
    %c0_i32_11 = arith.constant 0 : i32
    %24 = arith.cmpi ne, %23, %c0_i32_11 : i32
    scf.if %24 {
      %c0_12 = arith.constant 0 : index
      %c1 = arith.constant 1 : index
      %25 = vector.load %arg3[%c0_12, %c1] : memref<8x2xf32, #tpu.memory_space<vmem>>, vector<8x1xf32>
      %c0_13 = arith.constant 0 : index
      %c0_14 = arith.constant 0 : index
      %26 = vector.load %arg5[%c0_13, %c0_14] : memref<8x1xf32, #tpu.memory_space<vmem>>, vector<8x1xf32>
      %27 = arith.mulf %26, %25 : vector<8x1xf32>
      %28 = vector.shape_cast %27 : vector<8x1xf32> to vector<1x8x1xf32>
      %cst_15 = arith.constant dense<0.000000e+00> : vector<1xf32>
      %29 = vector.multi_reduction <add>, %28, %cst_15 [1, 2] : vector<1x8x1xf32> to vector<1xf32>
      %30 = vector.shape_cast %29 : vector<1xf32> to vector<1x1x1xf32>
      %31 = vector.extract %30[0, 0, 0] : f32 from vector<1x1x1xf32>
      %32 = vector.shape_cast %25 : vector<8x1xf32> to vector<1x8x1xf32>
      %cst_16 = arith.constant dense<0.000000e+00> : vector<1xf32>
      %33 = vector.multi_reduction <add>, %32, %cst_16 [1, 2] : vector<1x8x1xf32> to vector<1xf32>
      %34 = vector.shape_cast %33 : vector<1xf32> to vector<1x1x1xf32>
      %35 = vector.extract %34[0, 0, 0] : f32 from vector<1x1x1xf32>
      %36 = tpu.iota {dimensions = array<i32: 0>} : vector<8x128xi32>
      %c0_i32_17 = arith.constant 0 : i32
      %37 = vector.broadcast %c0_i32_17 : i32 to vector<8x128xi32>
      %38 = arith.cmpi eq, %36, %37 : vector<8x128xi32>
      %c1_i32 = arith.constant 1 : i32
      %39 = vector.broadcast %c1_i32 : i32 to vector<8x128xi32>
      %40 = arith.cmpi eq, %36, %39 : vector<8x128xi32>
      %cst_18 = arith.constant 0.000000e+00 : f32
      %41 = vector.broadcast %35 : f32 to vector<8x128xf32>
      %42 = vector.broadcast %cst_18 : f32 to vector<8x128xf32>
      %43 = arith.select %40, %41, %42 : vector<8x128xi1>, vector<8x128xf32>
      %44 = vector.broadcast %31 : f32 to vector<8x128xf32>
      %45 = arith.select %38, %44, %43 : vector<8x128xi1>, vector<8x128xf32>
      %c0_19 = arith.constant 0 : index
      %c0_20 = arith.constant 0 : index
      %46 = vector.load %arg4[%c0_19, %c0_20] : memref<8x128xf32, #tpu.memory_space<vmem>>, vector<8x128xf32>
      tpu.vector_store %arg4[%c0_19, %c0_20], %45 {strides = array<i32>} : memref<8x128xf32, #tpu.memory_space<vmem>>, vector<8x128xf32>,
    } else {
    }
    return
  }
  func.func @transform_0(%arg0: i32, %arg1: i32) -> (i32, i32) {
    %c0_i32 = arith.constant 0 : i32
    return %arg0, %arg1 : i32, i32
  }
  func.func @transform_1(%arg0: i32, %arg1: i32) -> (i32, i32) {
    %c0_i32 = arith.constant 0 : i32
    %c0_i32_0 = arith.constant 0 : i32
    return %arg0, %c0_i32 : i32, i32
  }
  func.func @transform_2(%arg0: i32, %arg1: i32) -> (i32, i32) {
    %c0_i32 = arith.constant 0 : i32
    %c0_i32_0 = arith.constant 0 : i32
    return %arg0, %c0_i32 : i32, i32
  }
}

</mosaic_0001>

<llo_original>
// kernel: tpu_custom_call.1
$region0: #{tpu_custom_call.1}
  #allocation0 [shape = 'u32[]', space=smem, size = 0x4, offset = 0x4, fixed_abs, tag = 'smem constant byte address 0x4 - core index']
  #allocation1 [shape = 'u32[144,128]{1,0:T(1,128)}', space=vmem, size = 0x12000, scoped, tag = 'internal scratch']
  #allocation2 [shape = 'f32[8,1]{1,0:T(8,128)}', space=vmem, size = 0x1000, scoped, tag = 'scratch operand']
  %s0 = inlined_call_operand.vmem [shape: f32[16,128], index: 0, kind: input, shape index: {}]
  %s1 = inlined_call_operand.vmem [shape: f32[16,2], index: 1, kind: input, shape index: {}]
  %s2 = inlined_call_operand.hbm [shape: f32[16,128], index: 2, kind: output, shape index: {}]
  %s3 = sld [smem:[#allocation0]]
  $region49: #{tpu_custom_call.1} parent=0
    _
  %s5 = ssub.s32 1, %s3
  %s6 = scalar_select 0, %s5, %s3
  $region1: #{tpu_custom_call.1} parent=0
    #allocation3 [shape = 'u8[8192]{0}', space=vmem, size = 0x2000, scoped, tag = 'output window, operand 0']
    #allocation4 [shape = 's32[2]{0}', space=sflag, size = 0x8, scoped, tag = 'scoped memory for tpu_custom_call.1']
    %7 = vsyncpa [#allocation4], 0
    %s8 = scalar_lea.sflag [#allocation4], 1
    %9 = vsyncpa %s8, 0
    loop: start=0, step=1, limit=4
    $region2: #{tpu_custom_call.1} parent=1 // loop_pre_header
      _
    $region3: #{tpu_custom_call.1} parent=1 // loop_header
      %s11 = sphi 0, %s15
      %p12 = scmp.ge.s32.totalorder %s11, 4
      %s18 = sphi 0, %s30
      %s19 = sphi 0, %s26
      %s20 = sphi 0, %s18
      %s21 = sphi 0, %s19
      %s22 = sphi 0, %s20
      %s23 = sphi 0, %s21
      %s35 = sphi 0, %s37
      %s38 = sphi 0, %s35
      %s39 = sphi 0, %s38
      %s55 = sphi 0, %s39
      %s61 = sphi 0, %s63
      %s64 = sphi 0, %s61
      %s65 = sphi 0, %s64
      %s81 = sphi 0, %s65
      %s87 = sphi 0, %s89
      %s90 = sphi 0, %s87
      %s91 = sphi 0, %s90
      %s107 = sphi 0, %s91
    $region4: #{tpu_custom_call.1} parent=1 // loop_header_branch
      %14 = sbr.rel (%p12) target = $region8
    $region5: #{tpu_custom_call.1} parent=1 // loop_body
      %s16 = ssub.s32 %s11, 1
      %s17 = ssub.s32 %s11, 2
      %s24 = sadd.s32 1, %s19
      %p25 = scmp.ge.s32.totalorder %s24, 1
      %s26 = scalar_select %p25, 0, %s24
      %s27 = sadd.s32 1, %s18
      %s28 = scalar_select %p25, %s27, %s18
      %p29 = scmp.ge.s32.totalorder %s28, 2
      %s30 = scalar_select %p29, 0, %s28
      %s31 = ssub.s32 %s18, %s30
      %s32 = ssub.s32 %s19, %s26
      %s33 = sor.u32 %s31, %s32
      %p34 = scmp.eq.s32.totalorder %s33, 0
      %s36 = sadd.s32 %s35, 1
      %s37 = scalar_select %p34, %s35, %s36
      %p40 = pneg %p34
      %p41 = scmp.eq.s32.totalorder %s11, 1
      %p42 = por %p40, %p41
      %p43 = scmp.ne.s32.totalorder %s35, %s38
      %p44 = scmp.eq.s32.totalorder %s11, 0
      %p45 = por %p43, %p44
      %p46 = scmp.ne.s32.totalorder %s35, %s38
      %p47 = scmp.eq.s32.totalorder %s16, 1
      %p48 = por %p46, %p47
      %p49 = scmp.ne.s32.totalorder %s38, %s39
      %p50 = scmp.eq.s32.totalorder %s16, 0
      %p51 = por %p49, %p50
      %p52 = scmp.ne.s32.totalorder %s38, %s39
      %p53 = scmp.eq.s32.totalorder %s17, 1
      %p54 = por %p52, %p53
      %p56 = scmp.ne.s32.totalorder %s39, %s55
      %p57 = scmp.eq.s32.totalorder %s17, 0
      %p58 = por %p56, %p57
      %s59 = ssub.s32 %s18, %s30
      %p60 = scmp.eq.s32.totalorder %s59, 0
      %s62 = sadd.s32 %s61, 1
      %s63 = scalar_select %p60, %s61, %s62
      %p66 = pneg %p60
      %p67 = scmp.eq.s32.totalorder %s11, 1
      %p68 = por %p66, %p67
      %p69 = scmp.ne.s32.totalorder %s61, %s64
      %p70 = scmp.eq.s32.totalorder %s11, 0
      %p71 = por %p69, %p70
      %p72 = scmp.ne.s32.totalorder %s61, %s64
      %p73 = scmp.eq.s32.totalorder %s16, 1
      %p74 = por %p72, %p73
      %p75 = scmp.ne.s32.totalorder %s64, %s65
      %p76 = scmp.eq.s32.totalorder %s16, 0
      %p77 = por %p75, %p76
      %p78 = scmp.ne.s32.totalorder %s64, %s65
      %p79 = scmp.eq.s32.totalorder %s17, 1
      %p80 = por %p78, %p79
      %p82 = scmp.ne.s32.totalorder %s65, %s81
      %p83 = scmp.eq.s32.totalorder %s17, 0
      %p84 = por %p82, %p83
      %s85 = ssub.s32 %s18, %s30
      %p86 = scmp.eq.s32.totalorder %s85, 0
      %s88 = sadd.s32 %s87, 1
      %s89 = scalar_select %p86, %s87, %s88
      %p92 = pneg %p86
      %p93 = scmp.eq.s32.totalorder %s11, 1
      %p94 = por %p92, %p93
      %p95 = scmp.ne.s32.totalorder %s87, %s90
      %p96 = scmp.eq.s32.totalorder %s11, 0
      %p97 = por %p95, %p96
      %p98 = scmp.ne.s32.totalorder %s87, %s90
      %p99 = scmp.eq.s32.totalorder %s16, 1
      %p100 = por %p98, %p99
      %p101 = scmp.ne.s32.totalorder %s90, %s91
      %p102 = scmp.eq.s32.totalorder %s16, 0
      %p103 = por %p101, %p102
      %p104 = scmp.ne.s32.totalorder %s90, %s91
      %p105 = scmp.eq.s32.totalorder %s17, 1
      %p106 = por %p104, %p105
      %p108 = scmp.ne.s32.totalorder %s91, %s107
      %p109 = scmp.eq.s32.totalorder %s17, 0
      %p110 = por %p108, %p109
      %p111 = scmp.le.s32.totalorder 1, %s11
      %p112 = scmp.lt.s32.totalorder %s11, 3
      %p113 = pnand %p111, %p112
      %p114 = pneg %p113
      // Predicated region
      $region9: #{tpu_custom_call.1} parent=5 // pred_check
        _
      $region10: #{tpu_custom_call.1} parent=5 // pred_check_branch
        %116 = sbr.rel (%p113) target = $region12
      $region11: #{tpu_custom_call.1} parent=5 // pred_region
        %s117 = ssub.s32 %s11, 1
      $region12: #{tpu_custom_call.1} parent=5 // pred_fallthru
        _
      %p118 = scmp.lt.s32.totalorder %s11, 2
      // Predicated region
      $region13: #{tpu_custom_call.1} parent=5 // pred_check
        %p119 = pneg %p118
      $region14: #{tpu_custom_call.1} parent=5 // pred_check_branch
        %121 = sbr.rel (%p119) target = $region16
      $region15: #{tpu_custom_call.1} parent=5 // pred_region
        // Predicated region
        $region17: #{tpu_custom_call.1} parent=15 // pred_check
          %p122 = pneg %p45
        $region18: #{tpu_custom_call.1} parent=15 // pred_check_branch
          %124 = sbr.rel (%p122) target = $region20
        $region19: #{tpu_custom_call.1} parent=15 // pred_region
          %p125 = scmp.lt.s32.totalorder %s18, 1
          %s126 = scalar_select %p125, %s18, 1
          %p127 = scmp.lt.s32.totalorder %s19, 0
          %s128 = scalar_select %p127, %s19, 0
          %s129 = sadd.s32 %s128, %s126
          %s130 = smul.addr %s129, 8
          %s131 = scalar_lea.vmem %s0, %s130
        $region20: #{tpu_custom_call.1} parent=15 // pred_fallthru
          _
        // Predicated region
        $region21: #{tpu_custom_call.1} parent=15 // pred_check
          %p132 = pneg %p71
        $region22: #{tpu_custom_call.1} parent=15 // pred_check_branch
          %134 = sbr.rel (%p132) target = $region24
        $region23: #{tpu_custom_call.1} parent=15 // pred_region
          %p135 = scmp.lt.s32.totalorder %s18, 1
          %s136 = scalar_select %p135, %s18, 1
          %s137 = smul.addr %s136, 8
          %s138 = scalar_lea.vmem %s1, %s137
        $region24: #{tpu_custom_call.1} parent=15 // pred_fallthru
          _
      $region16: #{tpu_custom_call.1} parent=5 // pred_fallthru
        _
      %p139 = scmp.le.s32.totalorder 1, %s11
      %p140 = scmp.lt.s32.totalorder %s11, 3
      %p141 = pnand %p139, %p140
      %p142 = pneg %p141
      // Predicated region
      $region25: #{tpu_custom_call.1} parent=5 // pred_check
        _
      $region26: #{tpu_custom_call.1} parent=5 // pred_check_branch
        %144 = sbr.rel (%p141) target = $region28
      $region27: #{tpu_custom_call.1} parent=5 // pred_region
        %s145 = ssub.s32 %s11, 1
        %p146 = scmp.lt.s32.totalorder %s20, 1
        %s147 = scalar_select %p146, %s20, 1
        %p148 = scmp.lt.s32.totalorder %s21, 0
        %s149 = scalar_select %p148, %s21, 0
        %s150 = sadd.s32 %s149, %s147
        %s151 = smul.addr %s150, 8
        %s152 = scalar_lea.vmem %s0, %s151
        %p153 = pneg %p51
        %p154 = pneg %p48
        %p155 = scmp.lt.s32.totalorder %s20, 1
        %s156 = scalar_select %p155, %s20, 1
        %s157 = smul.addr %s156, 8
        %s158 = scalar_lea.vmem %s1, %s157
        %p159 = pneg %p77
        %p160 = pneg %p74
        %p161 = pneg %p103
        %p162 = pneg %p100
        %s163 = sand.u32 %s90, 1
        %s164 = scalar_lea.sflag [#allocation4], %s163
        %s165 = sand.u32 %s90, 1
        %s166 = smul.addr %s165, 8
        %s167 = scalar_lea.vmem [#allocation3], %s166
        %p168 = scmp.lt.s32.totalorder %s20, 1
        %s169 = scalar_select %p168, %s20, 1
        %p170 = scmp.lt.s32.totalorder %s21, 0
        %s171 = scalar_select %p170, %s21, 0
        %s172 = sadd.s32 %s171, %s169
        %s173 = smul.addr %s172, 8
        %s174 = scalar_lea.vmem %s0, %s173
        %p175 = scmp.lt.s32.totalorder %s20, 1
        %s176 = scalar_select %p175, %s20, 1
        %s177 = smul.addr %s176, 8
        %s178 = scalar_lea.vmem %s1, %s177
        %p179 = scmp.eq.s32.totalorder %s21, 0
        // Predicated region
        $region29: #{tpu_custom_call.1} parent=27 // pred_check
          %p180 = pneg %p179
        $region30: #{tpu_custom_call.1} parent=27 // pred_check_branch
          %182 = sbr.rel (%p180) target = $region32
        $region31: #{tpu_custom_call.1} parent=27 // pred_region
          %vm183 = vcmask 7168
          %184 = vst.msk [vmem:[#allocation2] sm:$0xff] %vm183, 0.0
        $region32: #{tpu_custom_call.1} parent=27 // pred_fallthru
          _
        %v185 = vld [vmem:[%s174] sm:$0xff]
        %v186 = vld [vmem:[%s178] sm:$0xff]
        %v187 = vcvt.f32.s32.to.zero.pseudo %v186
        %v188 = vlaneseq
        %v189 = vand.u32 %v188, 127
        %s190 = smul.u32 %s21, 128
        %v191 = vstv %s190
        %v192 = vadd.s32 %v189, %v191
        %193 = vset.pattern.permute.xlu0 0
        %194 = vperm.xlu0 %193, %v187
        %v195 = vpop.permute.xlu0 %194
        %vm196 = vcmp.eq.s32.totalorder %v192, %v195
        %v197 = vsel %vm196, 0.9, 0.0007874016
        %v198 = vmul.f32 %v197, %v185
        %v199 = vld [vmem:[#allocation2] sm:$0xff]
        %200 = vadd.xlane.f32.xlu0 %v198
        %v201 = vpop.xlane.xlu0 %200
        %v202 = vadd.f32 %v199, %v201
        %vm203 = vcmask 7168
        %204 = vst.msk [vmem:[#allocation2] sm:$0xff] %vm203, %v202
        // Predicated region
        $region33: #{tpu_custom_call.1} parent=27 // pred_check
          %p205 = pneg %p179
        $region34: #{tpu_custom_call.1} parent=27 // pred_check_branch
          %207 = sbr.rel (%p205) target = $region36
        $region35: #{tpu_custom_call.1} parent=27 // pred_region
          %v208 = vld [vmem:[%s178] sm:$0xff]
          %v209 = vld [vmem:[#allocation2] sm:$0xff]
          %211 = vrot.lane.b32.xlu0 %v208, 127
          %v212 = vpop.permute.xlu0 %211
          %v214 = vmul.f32 %v209, %v212
          %v215 = vsel %vm203, %v214, 0.0
          %216 = vadd.xlane.f32.xlu0 %v215
          %v217 = vpop.xlane.xlu0 %216
          %v218 = vrot.slane %v217, 4
          %v219 = vadd.f32 %v217, %v218
          %v220 = vrot.slane %v219, 2
          %v221 = vadd.f32 %v219, %v220
          %v222 = vrot.slane %v221, 1
          %v223 = vadd.f32 %v221, %v222
          %s224 = vtos %v223
          %v225 = vsel %vm203, %v212, 0.0
          %226 = vadd.xlane.f32.xlu0 %v225
          %v227 = vpop.xlane.xlu0 %226
          %v228 = vrot.slane %v227, 4
          %v229 = vadd.f32 %v227, %v228
          %v230 = vrot.slane %v229, 2
          %v231 = vadd.f32 %v229, %v230
          %v232 = vrot.slane %v231, 1
          %v233 = vadd.f32 %v231, %v232
          %s234 = vtos %v233
          %v235 = vlaneseq
          %v236 = vshrl.u32 %v235, 7
          %vm237 = vcmp.eq.s32.totalorder %v236, 0
          %vm238 = vcmp.eq.s32.totalorder %v236, 1
          %v239 = vstv %s234
          %v240 = vsel %vm238, %v239, 0.0
          %v241 = vstv %s224
          %v242 = vsel %vm237, %v241, %v240
          %243 = vst [vmem:[%s167] sm:$0xff] %v242
        $region36: #{tpu_custom_call.1} parent=27 // pred_fallthru
          _
        %s244 = sand.u32 %s90, 1
        %s245 = scalar_lea.sflag [#allocation4], %s244
        %s246 = sand.u32 %s90, 1
        %s247 = smul.addr %s246, 8
        %s248 = scalar_lea.vmem [#allocation3], %s247
        // Predicated region
        $region37: #{tpu_custom_call.1} parent=27 // pred_check
          %p249 = pneg %p100
        $region38: #{tpu_custom_call.1} parent=27 // pred_check_branch
          %251 = sbr.rel (%p249) target = $region40
        $region39: #{tpu_custom_call.1} parent=27 // pred_region
          %s253 = ssub.s32 128, 128
          %254 = vsyncadd %s245, %s253
          %s255 = smul.addr %s20, 128
          %s256 = scalar_lea.hbm %s2, %s255
          %s258 = sshll.u32 %s248, 4
          %s259 = int_to_ptr.vmem [resolvable:$true] %s258
          %261 = dma.vmem_to_hbm [thread:$0]  %s259, 128, %s256, %s245
        $region40: #{tpu_custom_call.1} parent=27 // pred_fallthru
          _
      $region28: #{tpu_custom_call.1} parent=5 // pred_fallthru
        _
      %p262 = scmp.le.s32.totalorder 2, %s11
      // Predicated region
      $region41: #{tpu_custom_call.1} parent=5 // pred_check
        %p263 = pneg %p262
      $region42: #{tpu_custom_call.1} parent=5 // pred_check_branch
        %265 = sbr.rel (%p263) target = $region44
      $region43: #{tpu_custom_call.1} parent=5 // pred_region
        %s266 = ssub.s32 %s11, 2
        // Predicated region
        $region45: #{tpu_custom_call.1} parent=43 // pred_check
          %p267 = pneg %p106
        $region46: #{tpu_custom_call.1} parent=43 // pred_check_branch
          %269 = sbr.rel (%p267) target = $region48
        $region47: #{tpu_custom_call.1} parent=43 // pred_region
          %s270 = sand.u32 %s91, 1
          %s271 = scalar_lea.sflag [#allocation4], %s270
          %s272 = sand.u32 %s91, 1
          %s273 = smul.addr %s272, 8
          %s274 = scalar_lea.vmem [#allocation3], %s273
          %275 = dma.done %s271, 128
        $region48: #{tpu_custom_call.1} parent=43 // pred_fallthru
          _
      $region44: #{tpu_custom_call.1} parent=5 // pred_fallthru
        _
    $region6: #{tpu_custom_call.1} parent=1 // loop_footer
      %s15 = sadd.s32 1, %s11
    $region7: #{tpu_custom_call.1} parent=1 // loop_footer_branch
      %10 = sbr.rel target = $region3
    $region8: #{tpu_custom_call.1} parent=1 // loop_exit
      _
    %276 = vsyncpa [#allocation4], 1
    %s277 = scalar_lea.sflag [#allocation4], 1
    %278 = vsyncpa %s277, 1

</llo_original>
